<compile_context>
chip_gen: v5e
topology: v5e:2x2
jax: 0.10.0
libtpu: 0.0.40
codegen_flags: <defaults>
</compile_context>

<pallas_src>
import jax
import jax.numpy as jnp
from jax.experimental import pallas as pl
from jax.experimental.pallas import tpu as pltpu

INPUT_FEATURES = 28 * 28          # 784, fixed by x.view(-1, 28*28)
K_PAD = 896                       # 7 * 128: lane-dense K for layer-1 matmul
HIDDEN_UNITS = 32
OUTPUT_FEATURES = 10
OUT_PAD = 128                     # lane-dense output store; sliced back to 10 outside
EPS = 1e-5


def _round_up(n, m):
    return (n + m - 1) // m * m


def bnn_mlp_kernel(x_ref,
                   w1_ref, s1_ref, t1_ref,
                   w2_ref, s2_ref, t2_ref,
                   w3_ref, s3_ref, t3_ref,
                   w4_ref, s4_ref, t4_ref,
                   out_ref):
    """Fused 4-layer binarized MLP (eval mode).

    Weights arrive pre-binarized (+/-1) and pre-transposed to (in, out); BN is
    folded to per-feature scale/shift in the wrapper, so the kernel is just
    4 MXU matmuls + VPU affine + sign activation.
    """
    # Layer 1: f32 activations x f32 (+/-1) weights, K padded to 896.
    y = jnp.dot(x_ref[...], w1_ref[...], preferred_element_type=jnp.float32)
    y = y * s1_ref[...] + t1_ref[...]
    h = jnp.where(y >= 0.0, 1.0, -1.0).astype(jnp.bfloat16)   # +/-1 exact in bf16

    # Layers 2, 3: +/-1 bf16 activations x +/-1 bf16 weights (exact, f32 accum).
    for w_ref, s_ref, t_ref in ((w2_ref, s2_ref, t2_ref),
                                (w3_ref, s3_ref, t3_ref)):
        y = jnp.dot(h, w_ref[...], preferred_element_type=jnp.float32)
        y = y * s_ref[...] + t_ref[...]
        h = jnp.where(y >= 0.0, 1.0, -1.0).astype(jnp.bfloat16)

    # Layer 4: no activation; output lanes padded to 128 (zeros in pad columns).
    y = jnp.dot(h, w4_ref[...], preferred_element_type=jnp.float32)
    out_ref[...] = y * s4_ref[...] + t4_ref[...]


def _binsign(w):
    # Binarize to {-1, +1}; sign(0) -> +1 (standard BNN Binarize convention).
    return jnp.where(w >= 0.0, 1.0, -1.0)


def _fold_bn(params, i, n_pad):
    gamma = params[f"gamma{i}"].astype(jnp.float32)
    beta = params[f"beta{i}"].astype(jnp.float32)
    mean = params[f"mean{i}"].astype(jnp.float32)
    var = params[f"var{i}"].astype(jnp.float32)
    scale = gamma / jnp.sqrt(var + EPS)
    shift = beta - mean * scale
    n = scale.shape[0]
    s = jnp.zeros((1, n_pad), jnp.float32).at[0, :n].set(scale)
    t = jnp.zeros((1, n_pad), jnp.float32).at[0, :n].set(shift)
    return s, t


def bnn_mlp_forward(x, params, *, batch_tile=256):
    """x: (B, 784) float. params: dict of per-layer weights + BN stats."""
    B = x.shape[0]

    # --- constant (per-parameter-set) preprocessing: binarize, transpose, pad ---
    # TODO(synk): Dropout layers are identity at inference; training-mode
    # stochastic masks are not implemented here.
    w1 = _binsign(params["w1"]).T                                        # (784, 32)
    w1 = jnp.pad(w1, ((0, K_PAD - INPUT_FEATURES), (0, 0))).astype(jnp.float32)
    w2 = _binsign(params["w2"]).T.astype(jnp.bfloat16)                   # (32, 32)
    w3 = _binsign(params["w3"]).T.astype(jnp.bfloat16)                   # (32, 32)
    w4 = _binsign(params["w4"]).T                                        # (32, 10)
    w4 = jnp.pad(w4, ((0, 0), (0, OUT_PAD - OUTPUT_FEATURES))).astype(jnp.bfloat16)

    s1, t1 = _fold_bn(params, 1, HIDDEN_UNITS)
    s2, t2 = _fold_bn(params, 2, HIDDEN_UNITS)
    s3, t3 = _fold_bn(params, 3, HIDDEN_UNITS)
    s4, t4 = _fold_bn(params, 4, OUT_PAD)

    # --- batch tiling: pad B to a multiple of the batch tile, K to 896 ---
    tb = min(batch_tile, _round_up(B, 8))
    b_pad = _round_up(B, tb)
    xp = jnp.zeros((b_pad, K_PAD), jnp.float32).at[:B, :INPUT_FEATURES].set(
        x.astype(jnp.float32))

    consts = [w1, s1, t1, w2, s2, t2, w3, s3, t3, w4, s4, t4]

    def resident(arr):
        # Whole-array VMEM-resident block; block index never changes -> no re-DMA.
        return pl.BlockSpec(arr.shape, lambda i: (0, 0))

    out_pad = pl.pallas_call(
        bnn_mlp_kernel,
        out_shape=jax.ShapeDtypeStruct((b_pad, OUT_PAD), jnp.float32),
        grid=(b_pad // tb,),
        in_specs=[pl.BlockSpec((tb, K_PAD), lambda i: (i, 0))]
                 + [resident(a) for a in consts],
        out_specs=pl.BlockSpec((tb, OUT_PAD), lambda i: (i, 0)),
        compiler_params=pltpu.CompilerParams(
            dimension_semantics=("parallel",)),
    )(xp, *consts)

    return out_pad[:B, :OUTPUT_FEATURES]


def init_params(key):
    """Deterministic synthetic parameters (shapes from Net.__init__)."""
    dims = [(HIDDEN_UNITS, INPUT_FEATURES),
            (HIDDEN_UNITS, HIDDEN_UNITS),
            (HIDDEN_UNITS, HIDDEN_UNITS),
            (OUTPUT_FEATURES, HIDDEN_UNITS)]
    params = {}
    for i, (out_f, in_f) in enumerate(dims, start=1):
        key, kw, kg, kb, km, kv = jax.random.split(key, 6)
        params[f"w{i}"] = jax.random.uniform(kw, (out_f, in_f), jnp.float32, -1.0, 1.0)
        params[f"gamma{i}"] = 1.0 + 0.1 * jax.random.normal(kg, (out_f,), jnp.float32)
        params[f"beta{i}"] = 0.1 * jax.random.normal(kb, (out_f,), jnp.float32)
        params[f"mean{i}"] = 0.05 * jax.random.normal(km, (out_f,), jnp.float32)
        params[f"var{i}"] = jax.random.uniform(kv, (out_f,), jnp.float32, 0.5, 1.5)
    return params


def reference_forward(x, params):
    """Pure-JAX reference matching the PyTorch eval-mode forward."""
    h = x
    for i in (1, 2, 3, 4):
        wb = jnp.where(params[f"w{i}"] >= 0.0, 1.0, -1.0)
        y = h @ wb.T
        scale = params[f"gamma{i}"] / jnp.sqrt(params[f"var{i}"] + EPS)
        y = (y - params[f"mean{i}"]) * scale + params[f"beta{i}"]
        if i < 4:
            y = jnp.where(y >= 0.0, 1.0, -1.0)
        h = y
    return h


if __name__ == "__main__":
    key = jax.random.PRNGKey(0)
    key, kx = jax.random.split(key)

    batch = 8
    # MNIST-like input: (B, 1, 28, 28) -> view(-1, 784)
    x_img = jax.random.uniform(kx, (batch, 1, 28, 28), jnp.float32)
    x = x_img.reshape(-1, INPUT_FEATURES)

    params = init_params(key)

    out = bnn_mlp_forward(x, params)
    out = jax.block_until_ready(out)

    ref = reference_forward(x, params)
    assert out.shape == (batch, OUTPUT_FEATURES)
    assert jnp.allclose(out, ref, atol=1e-4, rtol=1e-4), "mismatch vs reference"

    print("KERNEL_OK")
</pallas_src>

<mosaic_0001>
module attributes {stable_mosaic.version = 11 : i64} {
  func.func @bnn_mlp_kernel(%arg0: i32, %arg1: memref<8x896xf32, #tpu.memory_space<vmem>>, %arg2: memref<896x32xf32, #tpu.memory_space<vmem>>, %arg3: memref<1x32xf32, #tpu.memory_space<vmem>>, %arg4: memref<1x32xf32, #tpu.memory_space<vmem>>, %arg5: memref<32x32xbf16, #tpu.memory_space<vmem>>, %arg6: memref<1x32xf32, #tpu.memory_space<vmem>>, %arg7: memref<1x32xf32, #tpu.memory_space<vmem>>, %arg8: memref<32x32xbf16, #tpu.memory_space<vmem>>, %arg9: memref<1x32xf32, #tpu.memory_space<vmem>>, %arg10: memref<1x32xf32, #tpu.memory_space<vmem>>, %arg11: memref<32x128xbf16, #tpu.memory_space<vmem>>, %arg12: memref<1x128xf32, #tpu.memory_space<vmem>>, %arg13: memref<1x128xf32, #tpu.memory_space<vmem>>, %arg14: memref<8x128xf32, #tpu.memory_space<vmem>>) attributes {dimension_semantics = [#tpu.dimension_semantics<parallel>], iteration_bounds = array<i64: 1>, scalar_prefetch = 0 : i64, scratch_operands = 0 : i64, tpu.core_type = #tpu.core_type<tc>, window_params = [{transform_indices = @transform_0, window_bounds = array<i64: 8, 896>}, {pipeline_mode = #tpu.pipeline_mode<synchronous>, transform_indices = @transform_1, window_bounds = array<i64: 896, 32>}, {pipeline_mode = #tpu.pipeline_mode<synchronous>, transform_indices = @transform_2, window_bounds = array<i64: 1, 32>}, {pipeline_mode = #tpu.pipeline_mode<synchronous>, transform_indices = @transform_3, window_bounds = array<i64: 1, 32>}, {pipeline_mode = #tpu.pipeline_mode<synchronous>, transform_indices = @transform_4, window_bounds = array<i64: 32, 32>}, {pipeline_mode = #tpu.pipeline_mode<synchronous>, transform_indices = @transform_5, window_bounds = array<i64: 1, 32>}, {pipeline_mode = #tpu.pipeline_mode<synchronous>, transform_indices = @transform_6, window_bounds = array<i64: 1, 32>}, {pipeline_mode = #tpu.pipeline_mode<synchronous>, transform_indices = @transform_7, window_bounds = array<i64: 32, 32>}, {pipeline_mode = #tpu.pipeline_mode<synchronous>, transform_indices = @transform_8, window_bounds = array<i64: 1, 32>}, {pipeline_mode = #tpu.pipeline_mode<synchronous>, transform_indices = @transform_9, window_bounds = array<i64: 1, 32>}, {pipeline_mode = #tpu.pipeline_mode<synchronous>, transform_indices = @transform_10, window_bounds = array<i64: 32, 128>}, {pipeline_mode = #tpu.pipeline_mode<synchronous>, transform_indices = @transform_11, window_bounds = array<i64: 1, 128>}, {pipeline_mode = #tpu.pipeline_mode<synchronous>, transform_indices = @transform_12, window_bounds = array<i64: 1, 128>}, {transform_indices = @transform_13, window_bounds = array<i64: 8, 128>}]} {
    %c0 = arith.constant 0 : index
    %c0_0 = arith.constant 0 : index
    %0 = vector.load %arg1[%c0, %c0_0] : memref<8x896xf32, #tpu.memory_space<vmem>>, vector<8x896xf32>
    %c0_1 = arith.constant 0 : index
    %c0_2 = arith.constant 0 : index
    %1 = vector.load %arg2[%c0_1, %c0_2] : memref<896x32xf32, #tpu.memory_space<vmem>>, vector<896x32xf32>
    %cst = arith.constant dense<0.000000e+00> : vector<8x32xf32>
    %2 = tpu.matmul %0, %1, %cst {dimension_numbers = #tpu.dot_dimension_numbers<[1], [0], [0], [1], [0, 0, 1, 1], [], []>} : vector<8x896xf32>, vector<896x32xf32>, vector<8x32xf32> -> vector<8x32xf32>
    %c0_3 = arith.constant 0 : index
    %c0_4 = arith.constant 0 : index
    %3 = vector.load %arg3[%c0_3, %c0_4] : memref<1x32xf32, #tpu.memory_space<vmem>>, vector<1x32xf32>
    %4 = vector.broadcast %3 : vector<1x32xf32> to vector<8x32xf32>
    %5 = arith.mulf %2, %4 : vector<8x32xf32>
    %c0_5 = arith.constant 0 : index
    %c0_6 = arith.constant 0 : index
    %6 = vector.load %arg4[%c0_5, %c0_6] : memref<1x32xf32, #tpu.memory_space<vmem>>, vector<1x32xf32>
    %7 = vector.broadcast %6 : vector<1x32xf32> to vector<8x32xf32>
    %8 = arith.addf %5, %7 : vector<8x32xf32>
    %cst_7 = arith.constant 0.000000e+00 : f32
    %9 = vector.broadcast %cst_7 : f32 to vector<8x32xf32>
    %10 = arith.cmpf oge, %8, %9 : vector<8x32xf32>
    %cst_8 = arith.constant 1.000000e+00 : f32
    %cst_9 = arith.constant -1.000000e+00 : f32
    %11 = vector.broadcast %cst_8 : f32 to vector<8x32xf32>
    %12 = vector.broadcast %cst_9 : f32 to vector<8x32xf32>
    %13 = arith.select %10, %11, %12 : vector<8x32xi1>, vector<8x32xf32>
    %14 = arith.truncf %13 : vector<8x32xf32> to vector<8x32xbf16>
    %c0_10 = arith.constant 0 : index
    %c0_11 = arith.constant 0 : index
    %15 = vector.load %arg5[%c0_10, %c0_11] : memref<32x32xbf16, #tpu.memory_space<vmem>>, vector<32x32xbf16>
    %cst_12 = arith.constant dense<0.000000e+00> : vector<8x32xf32>
    %16 = tpu.matmul %14, %15, %cst_12 {dimension_numbers = #tpu.dot_dimension_numbers<[1], [0], [0], [1], [0, 0, 1, 1], [], []>} : vector<8x32xbf16>, vector<32x32xbf16>, vector<8x32xf32> -> vector<8x32xf32>
    %c0_13 = arith.constant 0 : index
    %c0_14 = arith.constant 0 : index
    %17 = vector.load %arg6[%c0_13, %c0_14] : memref<1x32xf32, #tpu.memory_space<vmem>>, vector<1x32xf32>
    %18 = vector.broadcast %17 : vector<1x32xf32> to vector<8x32xf32>
    %19 = arith.mulf %16, %18 : vector<8x32xf32>
    %c0_15 = arith.constant 0 : index
    %c0_16 = arith.constant 0 : index
    %20 = vector.load %arg7[%c0_15, %c0_16] : memref<1x32xf32, #tpu.memory_space<vmem>>, vector<1x32xf32>
    %21 = vector.broadcast %20 : vector<1x32xf32> to vector<8x32xf32>
    %22 = arith.addf %19, %21 : vector<8x32xf32>
    %cst_17 = arith.constant 0.000000e+00 : f32
    %23 = vector.broadcast %cst_17 : f32 to vector<8x32xf32>
    %24 = arith.cmpf oge, %22, %23 : vector<8x32xf32>
    %cst_18 = arith.constant 1.000000e+00 : f32
    %cst_19 = arith.constant -1.000000e+00 : f32
    %25 = vector.broadcast %cst_18 : f32 to vector<8x32xf32>
    %26 = vector.broadcast %cst_19 : f32 to vector<8x32xf32>
    %27 = arith.select %24, %25, %26 : vector<8x32xi1>, vector<8x32xf32>
    %28 = arith.truncf %27 : vector<8x32xf32> to vector<8x32xbf16>
    %c0_20 = arith.constant 0 : index
    %c0_21 = arith.constant 0 : index
    %29 = vector.load %arg8[%c0_20, %c0_21] : memref<32x32xbf16, #tpu.memory_space<vmem>>, vector<32x32xbf16>
    %cst_22 = arith.constant dense<0.000000e+00> : vector<8x32xf32>
    %30 = tpu.matmul %28, %29, %cst_22 {dimension_numbers = #tpu.dot_dimension_numbers<[1], [0], [0], [1], [0, 0, 1, 1], [], []>} : vector<8x32xbf16>, vector<32x32xbf16>, vector<8x32xf32> -> vector<8x32xf32>
    %c0_23 = arith.constant 0 : index
    %c0_24 = arith.constant 0 : index
    %31 = vector.load %arg9[%c0_23, %c0_24] : memref<1x32xf32, #tpu.memory_space<vmem>>, vector<1x32xf32>
    %32 = vector.broadcast %31 : vector<1x32xf32> to vector<8x32xf32>
    %33 = arith.mulf %30, %32 : vector<8x32xf32>
    %c0_25 = arith.constant 0 : index
    %c0_26 = arith.constant 0 : index
    %34 = vector.load %arg10[%c0_25, %c0_26] : memref<1x32xf32, #tpu.memory_space<vmem>>, vector<1x32xf32>
    %35 = vector.broadcast %34 : vector<1x32xf32> to vector<8x32xf32>
    %36 = arith.addf %33, %35 : vector<8x32xf32>
    %cst_27 = arith.constant 0.000000e+00 : f32
    %37 = vector.broadcast %cst_27 : f32 to vector<8x32xf32>
    %38 = arith.cmpf oge, %36, %37 : vector<8x32xf32>
    %cst_28 = arith.constant 1.000000e+00 : f32
    %cst_29 = arith.constant -1.000000e+00 : f32
    %39 = vector.broadcast %cst_28 : f32 to vector<8x32xf32>
    %40 = vector.broadcast %cst_29 : f32 to vector<8x32xf32>
    %41 = arith.select %38, %39, %40 : vector<8x32xi1>, vector<8x32xf32>
    %42 = arith.truncf %41 : vector<8x32xf32> to vector<8x32xbf16>
    %c0_30 = arith.constant 0 : index
    %c0_31 = arith.constant 0 : index
    %43 = vector.load %arg11[%c0_30, %c0_31] : memref<32x128xbf16, #tpu.memory_space<vmem>>, vector<32x128xbf16>
    %cst_32 = arith.constant dense<0.000000e+00> : vector<8x128xf32>
    %44 = tpu.matmul %42, %43, %cst_32 {dimension_numbers = #tpu.dot_dimension_numbers<[1], [0], [0], [1], [0, 0, 1, 1], [], []>} : vector<8x32xbf16>, vector<32x128xbf16>, vector<8x128xf32> -> vector<8x128xf32>
    %c0_33 = arith.constant 0 : index
    %c0_34 = arith.constant 0 : index
    %45 = vector.load %arg12[%c0_33, %c0_34] : memref<1x128xf32, #tpu.memory_space<vmem>>, vector<1x128xf32>
    %46 = vector.broadcast %45 : vector<1x128xf32> to vector<8x128xf32>
    %47 = arith.mulf %44, %46 : vector<8x128xf32>
    %c0_35 = arith.constant 0 : index
    %c0_36 = arith.constant 0 : index
    %48 = vector.load %arg13[%c0_35, %c0_36] : memref<1x128xf32, #tpu.memory_space<vmem>>, vector<1x128xf32>
    %49 = vector.broadcast %48 : vector<1x128xf32> to vector<8x128xf32>
    %50 = arith.addf %47, %49 : vector<8x128xf32>
    %c0_37 = arith.constant 0 : index
    %c0_38 = arith.constant 0 : index
    %51 = vector.load %arg14[%c0_37, %c0_38] : memref<8x128xf32, #tpu.memory_space<vmem>>, vector<8x128xf32>
    tpu.vector_store %arg14[%c0_37, %c0_38], %50 {strides = array<i32>} : memref<8x128xf32, #tpu.memory_space<vmem>>, vector<8x128xf32>,
    return
  }
  func.func @transform_0(%arg0: i32) -> (i32, i32) {
    %c0_i32 = arith.constant 0 : i32
    %c0_i32_0 = arith.constant 0 : i32
    return %arg0, %c0_i32 : i32, i32
  }
  func.func @transform_1(%arg0: i32) -> (i32, i32) {
    %c0_i32 = arith.constant 0 : i32
    %c0_i32_0 = arith.constant 0 : i32
    %c0_i32_1 = arith.constant 0 : i32
    return %c0_i32, %c0_i32_0 : i32, i32
  }
  func.func @transform_2(%arg0: i32) -> (i32, i32) {
    %c0_i32 = arith.constant 0 : i32
    %c0_i32_0 = arith.constant 0 : i32
    %c0_i32_1 = arith.constant 0 : i32
    return %c0_i32, %c0_i32_0 : i32, i32
  }
  func.func @transform_3(%arg0: i32) -> (i32, i32) {
    %c0_i32 = arith.constant 0 : i32
    %c0_i32_0 = arith.constant 0 : i32
    %c0_i32_1 = arith.constant 0 : i32
    return %c0_i32, %c0_i32_0 : i32, i32
  }
  func.func @transform_4(%arg0: i32) -> (i32, i32) {
    %c0_i32 = arith.constant 0 : i32
    %c0_i32_0 = arith.constant 0 : i32
    %c0_i32_1 = arith.constant 0 : i32
    return %c0_i32, %c0_i32_0 : i32, i32
  }
  func.func @transform_5(%arg0: i32) -> (i32, i32) {
    %c0_i32 = arith.constant 0 : i32
    %c0_i32_0 = arith.constant 0 : i32
    %c0_i32_1 = arith.constant 0 : i32
    return %c0_i32, %c0_i32_0 : i32, i32
  }
  func.func @transform_6(%arg0: i32) -> (i32, i32) {
    %c0_i32 = arith.constant 0 : i32
    %c0_i32_0 = arith.constant 0 : i32
    %c0_i32_1 = arith.constant 0 : i32
    return %c0_i32, %c0_i32_0 : i32, i32
  }
  func.func @transform_7(%arg0: i32) -> (i32, i32) {
    %c0_i32 = arith.constant 0 : i32
    %c0_i32_0 = arith.constant 0 : i32
    %c0_i32_1 = arith.constant 0 : i32
    return %c0_i32, %c0_i32_0 : i32, i32
  }
  func.func @transform_8(%arg0: i32) -> (i32, i32) {
    %c0_i32 = arith.constant 0 : i32
    %c0_i32_0 = arith.constant 0 : i32
    %c0_i32_1 = arith.constant 0 : i32
    return %c0_i32, %c0_i32_0 : i32, i32
  }
  func.func @transform_9(%arg0: i32) -> (i32, i32) {
    %c0_i32 = arith.constant 0 : i32
    %c0_i32_0 = arith.constant 0 : i32
    %c0_i32_1 = arith.constant 0 : i32
    return %c0_i32, %c0_i32_0 : i32, i32
  }
  func.func @transform_10(%arg0: i32) -> (i32, i32) {
    %c0_i32 = arith.constant 0 : i32
    %c0_i32_0 = arith.constant 0 : i32
    %c0_i32_1 = arith.constant 0 : i32
    return %c0_i32, %c0_i32_0 : i32, i32
  }
  func.func @transform_11(%arg0: i32) -> (i32, i32) {
    %c0_i32 = arith.constant 0 : i32
    %c0_i32_0 = arith.constant 0 : i32
    %c0_i32_1 = arith.constant 0 : i32
    return %c0_i32, %c0_i32_0 : i32, i32
  }
  func.func @transform_12(%arg0: i32) -> (i32, i32) {
    %c0_i32 = arith.constant 0 : i32
    %c0_i32_0 = arith.constant 0 : i32
    %c0_i32_1 = arith.constant 0 : i32
    return %c0_i32, %c0_i32_0 : i32, i32
  }
  func.func @transform_13(%arg0: i32) -> (i32, i32) {
    %c0_i32 = arith.constant 0 : i32
    %c0_i32_0 = arith.constant 0 : i32
    return %arg0, %c0_i32 : i32, i32
  }
}

</mosaic_0001>

<llo_original>
// kernel: tpu_custom_call.1
$region0: #{tpu_custom_call.1}
  #allocation0 [shape = 'u32[]', space=smem, size = 0x4, offset = 0x4, fixed_abs, tag = 'smem constant byte address 0x4 - core index']
  #allocation1 [shape = 'u32[72,128]{1,0:T(1,128)}', space=vmem, size = 0x9000, scoped, tag = 'internal scratch']
  %s0 = inlined_call_operand.vmem [shape: f32[8,896], index: 0, kind: input, shape index: {}]
  %s1 = inlined_call_operand.vmem [shape: f32[896,32], index: 1, kind: input, shape index: {}]
  %s2 = inlined_call_operand.vmem [shape: f32[1,32], index: 2, kind: input, shape index: {}]
  %s3 = inlined_call_operand.vmem [shape: f32[1,32], index: 3, kind: input, shape index: {}]
  %s4 = inlined_call_operand.vmem [shape: bf16[32,32], index: 4, kind: input, shape index: {}]
  %s5 = inlined_call_operand.vmem [shape: f32[1,32], index: 5, kind: input, shape index: {}]
  %s6 = inlined_call_operand.vmem [shape: f32[1,32], index: 6, kind: input, shape index: {}]
  %s7 = inlined_call_operand.vmem [shape: bf16[32,32], index: 7, kind: input, shape index: {}]
  %s8 = inlined_call_operand.vmem [shape: f32[1,32], index: 8, kind: input, shape index: {}]
  %s9 = inlined_call_operand.vmem [shape: f32[1,32], index: 9, kind: input, shape index: {}]
  %s10 = inlined_call_operand.vmem [shape: bf16[32,128], index: 10, kind: input, shape index: {}]
  %s11 = inlined_call_operand.vmem [shape: f32[1,128], index: 11, kind: input, shape index: {}]
  %s12 = inlined_call_operand.vmem [shape: f32[1,128], index: 12, kind: input, shape index: {}]
  %s13 = inlined_call_operand.hbm [shape: f32[8,128], index: 13, kind: output, shape index: {}]
  %s14 = sld [smem:[#allocation0]]
  $region62: #{tpu_custom_call.1} parent=0
    _
  %s16 = ssub.s32 1, %s14
  %s17 = scalar_select 0, %s16, %s14
  $region1: #{tpu_custom_call.1} parent=0
    #allocation2 [shape = 'u8[4096]{0}', space=vmem, size = 0x1000, scoped, tag = 'output window, operand 0, single buffered']
    #allocation3 [shape = 's32[1]{0}', space=sflag, size = 0x4, scoped, tag = 'scoped memory for tpu_custom_call.1']
    %18 = vsyncpa [#allocation3], 0
    // Predicated region
    $region2: #{tpu_custom_call.1} parent=1 // pred_check
      _
    $region3: #{tpu_custom_call.1} parent=1 // pred_check_branch
      %20 = sbr.rel (0) target = $region5
    $region4: #{tpu_custom_call.1} parent=1 // pred_region
      _
    $region5: #{tpu_custom_call.1} parent=1 // pred_fallthru
      _
    // Predicated region
    $region6: #{tpu_custom_call.1} parent=1 // pred_check
      _
    $region7: #{tpu_custom_call.1} parent=1 // pred_check_branch
      %22 = sbr.rel (0) target = $region9
    $region8: #{tpu_custom_call.1} parent=1 // pred_region
      _
    $region9: #{tpu_custom_call.1} parent=1 // pred_fallthru
      _
    // Predicated region
    $region10: #{tpu_custom_call.1} parent=1 // pred_check
      _
    $region11: #{tpu_custom_call.1} parent=1 // pred_check_branch
      %24 = sbr.rel (0) target = $region13
    $region12: #{tpu_custom_call.1} parent=1 // pred_region
      _
    $region13: #{tpu_custom_call.1} parent=1 // pred_fallthru
      _
    // Predicated region
    $region14: #{tpu_custom_call.1} parent=1 // pred_check
      _
    $region15: #{tpu_custom_call.1} parent=1 // pred_check_branch
      %26 = sbr.rel (0) target = $region17
    $region16: #{tpu_custom_call.1} parent=1 // pred_region
      _
    $region17: #{tpu_custom_call.1} parent=1 // pred_fallthru
      _
    // Predicated region
    $region18: #{tpu_custom_call.1} parent=1 // pred_check
      _
    $region19: #{tpu_custom_call.1} parent=1 // pred_check_branch
      %28 = sbr.rel (0) target = $region21
    $region20: #{tpu_custom_call.1} parent=1 // pred_region
      _
    $region21: #{tpu_custom_call.1} parent=1 // pred_fallthru
      _
    // Predicated region
    $region22: #{tpu_custom_call.1} parent=1 // pred_check
      _
    $region23: #{tpu_custom_call.1} parent=1 // pred_check_branch
      %30 = sbr.rel (0) target = $region25
    $region24: #{tpu_custom_call.1} parent=1 // pred_region
      _
    $region25: #{tpu_custom_call.1} parent=1 // pred_fallthru
      _
    // Predicated region
    $region26: #{tpu_custom_call.1} parent=1 // pred_check
      _
    $region27: #{tpu_custom_call.1} parent=1 // pred_check_branch
      %32 = sbr.rel (0) target = $region29
    $region28: #{tpu_custom_call.1} parent=1 // pred_region
      _
    $region29: #{tpu_custom_call.1} parent=1 // pred_fallthru
      _
    // Predicated region
    $region30: #{tpu_custom_call.1} parent=1 // pred_check
      _
    $region31: #{tpu_custom_call.1} parent=1 // pred_check_branch
      %34 = sbr.rel (0) target = $region33
    $region32: #{tpu_custom_call.1} parent=1 // pred_region
      _
    $region33: #{tpu_custom_call.1} parent=1 // pred_fallthru
      _
    // Predicated region
    $region34: #{tpu_custom_call.1} parent=1 // pred_check
      _
    $region35: #{tpu_custom_call.1} parent=1 // pred_check_branch
      %36 = sbr.rel (0) target = $region37
    $region36: #{tpu_custom_call.1} parent=1 // pred_region
      _
    $region37: #{tpu_custom_call.1} parent=1 // pred_fallthru
      _
    // Predicated region
    $region38: #{tpu_custom_call.1} parent=1 // pred_check
      _
    $region39: #{tpu_custom_call.1} parent=1 // pred_check_branch
      %38 = sbr.rel (0) target = $region41
    $region40: #{tpu_custom_call.1} parent=1 // pred_region
      _
    $region41: #{tpu_custom_call.1} parent=1 // pred_fallthru
      _
    // Predicated region
    $region42: #{tpu_custom_call.1} parent=1 // pred_check
      _
    $region43: #{tpu_custom_call.1} parent=1 // pred_check_branch
      %40 = sbr.rel (0) target = $region45
    $region44: #{tpu_custom_call.1} parent=1 // pred_region
      _
    $region45: #{tpu_custom_call.1} parent=1 // pred_fallthru
      _
    // Predicated region
    $region46: #{tpu_custom_call.1} parent=1 // pred_check
      _
    $region47: #{tpu_custom_call.1} parent=1 // pred_check_branch
      %42 = sbr.rel (0) target = $region49
    $region48: #{tpu_custom_call.1} parent=1 // pred_region
      _
    $region49: #{tpu_custom_call.1} parent=1 // pred_fallthru
      _
    // Predicated region
    $region50: #{tpu_custom_call.1} parent=1 // pred_check
      _
    $region51: #{tpu_custom_call.1} parent=1 // pred_check_branch
      %44 = sbr.rel (0) target = $region53
    $region52: #{tpu_custom_call.1} parent=1 // pred_region
      _
    $region53: #{tpu_custom_call.1} parent=1 // pred_fallthru
      _
    %v46 = vld [vmem:[%s0] sm:$0xff]
    %v47 = vld [vmem:[%s0 + $0x8] sm:$0xff]
    %v48 = vld [vmem:[%s0 + $0x10] sm:$0xff]
    %v49 = vld [vmem:[%s0 + $0x18] sm:$0xff]
    %v50 = vld [vmem:[%s0 + $0x20] sm:$0xff]
    %v51 = vld [vmem:[%s0 + $0x28] sm:$0xff]
    %v52 = vld [vmem:[%s0 + $0x30] sm:$0xff]
    %v53 = vld [vmem:[%s1] sm:$0xff]
    %v54 = vld [vmem:[%s1 + $0x8] sm:$0xff]
    %v55 = vld [vmem:[%s1 + $0x10] sm:$0xff]
    %v56 = vld [vmem:[%s1 + $0x18] sm:$0xff]
    %v57 = vld [vmem:[%s1 + $0x20] sm:$0xff]
    %v58 = vld [vmem:[%s1 + $0x28] sm:$0xff]
    %v59 = vld [vmem:[%s1 + $0x30] sm:$0xff]
    %v60 = vld [vmem:[%s1 + $0x38] sm:$0xff]
    %v61 = vld [vmem:[%s1 + $0x40] sm:$0xff]
    %v62 = vld [vmem:[%s1 + $0x48] sm:$0xff]
    %v63 = vld [vmem:[%s1 + $0x50] sm:$0xff]
    %v64 = vld [vmem:[%s1 + $0x58] sm:$0xff]
    %v65 = vld [vmem:[%s1 + $0x60] sm:$0xff]
    %v66 = vld [vmem:[%s1 + $0x68] sm:$0xff]
    %v67 = vld [vmem:[%s1 + $0x70] sm:$0xff]
    %v68 = vld [vmem:[%s1 + $0x78] sm:$0xff]
    %v69 = vld [vmem:[%s1 + $0x80] sm:$0xff]
    %v70 = vld [vmem:[%s1 + $0x88] sm:$0xff]
    %v71 = vld [vmem:[%s1 + $0x90] sm:$0xff]
    %v72 = vld [vmem:[%s1 + $0x98] sm:$0xff]
    %v73 = vld [vmem:[%s1 + $0xa0] sm:$0xff]
    %v74 = vld [vmem:[%s1 + $0xa8] sm:$0xff]
    %v75 = vld [vmem:[%s1 + $0xb0] sm:$0xff]
    %v76 = vld [vmem:[%s1 + $0xb8] sm:$0xff]
    %v77 = vld [vmem:[%s1 + $0xc0] sm:$0xff]
    %v78 = vld [vmem:[%s1 + $0xc8] sm:$0xff]
    %v79 = vld [vmem:[%s1 + $0xd0] sm:$0xff]
    %v80 = vld [vmem:[%s1 + $0xd8] sm:$0xff]
    %v81 = vld [vmem:[%s1 + $0xe0] sm:$0xff]
    %v82 = vld [vmem:[%s1 + $0xe8] sm:$0xff]
    %v83 = vld [vmem:[%s1 + $0xf0] sm:$0xff]
    %v84 = vld [vmem:[%s1 + $0xf8] sm:$0xff]
    %v85 = vld [vmem:[%s1 + $0x100] sm:$0xff]
    %v86 = vld [vmem:[%s1 + $0x108] sm:$0xff]
    %v87 = vld [vmem:[%s1 + $0x110] sm:$0xff]
    %v88 = vld [vmem:[%s1 + $0x118] sm:$0xff]
    %v89 = vld [vmem:[%s1 + $0x120] sm:$0xff]
    %v90 = vld [vmem:[%s1 + $0x128] sm:$0xff]
    %v91 = vld [vmem:[%s1 + $0x130] sm:$0xff]
    %v92 = vld [vmem:[%s1 + $0x138] sm:$0xff]
    %v93 = vld [vmem:[%s1 + $0x140] sm:$0xff]
    %v94 = vld [vmem:[%s1 + $0x148] sm:$0xff]
    %v95 = vld [vmem:[%s1 + $0x150] sm:$0xff]
    %v96 = vld [vmem:[%s1 + $0x158] sm:$0xff]
    %v97 = vld [vmem:[%s1 + $0x160] sm:$0xff]
    %v98 = vld [vmem:[%s1 + $0x168] sm:$0xff]
    %v99 = vld [vmem:[%s1 + $0x170] sm:$0xff]
    %v100 = vld [vmem:[%s1 + $0x178] sm:$0xff]
    %v101 = vld [vmem:[%s1 + $0x180] sm:$0xff]
    %v102 = vld [vmem:[%s1 + $0x188] sm:$0xff]
    %v103 = vld [vmem:[%s1 + $0x190] sm:$0xff]
    %v104 = vld [vmem:[%s1 + $0x198] sm:$0xff]
    %v105 = vld [vmem:[%s1 + $0x1a0] sm:$0xff]
    %v106 = vld [vmem:[%s1 + $0x1a8] sm:$0xff]
    %v107 = vld [vmem:[%s1 + $0x1b0] sm:$0xff]
    %v108 = vld [vmem:[%s1 + $0x1b8] sm:$0xff]
    %v109 = vld [vmem:[%s1 + $0x1c0] sm:$0xff]
    %v110 = vld [vmem:[%s1 + $0x1c8] sm:$0xff]
    %v111 = vld [vmem:[%s1 + $0x1d0] sm:$0xff]
    %v112 = vld [vmem:[%s1 + $0x1d8] sm:$0xff]
    %v113 = vld [vmem:[%s1 + $0x1e0] sm:$0xff]
    %v114 = vld [vmem:[%s1 + $0x1e8] sm:$0xff]
    %v115 = vld [vmem:[%s1 + $0x1f0] sm:$0xff]
    %v116 = vld [vmem:[%s1 + $0x1f8] sm:$0xff]
    %v117 = vld [vmem:[%s1 + $0x200] sm:$0xff]
    %v118 = vld [vmem:[%s1 + $0x208] sm:$0xff]
    %v119 = vld [vmem:[%s1 + $0x210] sm:$0xff]
    %v120 = vld [vmem:[%s1 + $0x218] sm:$0xff]
    %v121 = vld [vmem:[%s1 + $0x220] sm:$0xff]
    %v122 = vld [vmem:[%s1 + $0x228] sm:$0xff]
    %v123 = vld [vmem:[%s1 + $0x230] sm:$0xff]
    %v124 = vld [vmem:[%s1 + $0x238] sm:$0xff]
    %v125 = vld [vmem:[%s1 + $0x240] sm:$0xff]
    %v126 = vld [vmem:[%s1 + $0x248] sm:$0xff]
    %v127 = vld [vmem:[%s1 + $0x250] sm:$0xff]
    %v128 = vld [vmem:[%s1 + $0x258] sm:$0xff]
    %v129 = vld [vmem:[%s1 + $0x260] sm:$0xff]
    %v130 = vld [vmem:[%s1 + $0x268] sm:$0xff]
    %v131 = vld [vmem:[%s1 + $0x270] sm:$0xff]
    %v132 = vld [vmem:[%s1 + $0x278] sm:$0xff]
    %v133 = vld [vmem:[%s1 + $0x280] sm:$0xff]
    %v134 = vld [vmem:[%s1 + $0x288] sm:$0xff]
    %v135 = vld [vmem:[%s1 + $0x290] sm:$0xff]
    %v136 = vld [vmem:[%s1 + $0x298] sm:$0xff]
    %v137 = vld [vmem:[%s1 + $0x2a0] sm:$0xff]
    %v138 = vld [vmem:[%s1 + $0x2a8] sm:$0xff]
    %v139 = vld [vmem:[%s1 + $0x2b0] sm:$0xff]
    %v140 = vld [vmem:[%s1 + $0x2b8] sm:$0xff]
    %v141 = vld [vmem:[%s1 + $0x2c0] sm:$0xff]
    %v142 = vld [vmem:[%s1 + $0x2c8] sm:$0xff]
    %v143 = vld [vmem:[%s1 + $0x2d0] sm:$0xff]
    %v144 = vld [vmem:[%s1 + $0x2d8] sm:$0xff]
    %v145 = vld [vmem:[%s1 + $0x2e0] sm:$0xff]
    %v146 = vld [vmem:[%s1 + $0x2e8] sm:$0xff]
    %v147 = vld [vmem:[%s1 + $0x2f0] sm:$0xff]
    %v148 = vld [vmem:[%s1 + $0x2f8] sm:$0xff]
    %v149 = vld [vmem:[%s1 + $0x300] sm:$0xff]
    %v150 = vld [vmem:[%s1 + $0x308] sm:$0xff]
    %v151 = vld [vmem:[%s1 + $0x310] sm:$0xff]
    %v152 = vld [vmem:[%s1 + $0x318] sm:$0xff]
    %v153 = vld [vmem:[%s1 + $0x320] sm:$0xff]
    %v154 = vld [vmem:[%s1 + $0x328] sm:$0xff]
    %v155 = vld [vmem:[%s1 + $0x330] sm:$0xff]
    %v156 = vld [vmem:[%s1 + $0x338] sm:$0xff]
    %v157 = vld [vmem:[%s1 + $0x340] sm:$0xff]
    %v158 = vld [vmem:[%s1 + $0x348] sm:$0xff]
    %v159 = vld [vmem:[%s1 + $0x350] sm:$0xff]
    %v160 = vld [vmem:[%s1 + $0x358] sm:$0xff]
    %v161 = vld [vmem:[%s1 + $0x360] sm:$0xff]
    %v162 = vld [vmem:[%s1 + $0x368] sm:$0xff]
    %v163 = vld [vmem:[%s1 + $0x370] sm:$0xff]
    %v164 = vld [vmem:[%s1 + $0x378] sm:$0xff]
    %165 = vmatpush.msra.mxu0 %v68
    %166 = vmatpush.msra.mxu0 %v67
    %167 = vmatpush.msra.mxu0 %v66
    %168 = vmatpush.msra.mxu0 %v65
    %169 = vmatpush.msra.mxu0 %v64
    %170 = vmatpush.msra.mxu0 %v63
    %171 = vmatpush.msra.mxu0 %v62
    %172 = vmatpush.msra.mxu0 %v61
    %173 = vmatpush.msra.mxu0 %v60
    %174 = vmatpush.msra.mxu0 %v59
    %175 = vmatpush.msra.mxu0 %v58
    %176 = vmatpush.msra.mxu0 %v57
    %177 = vmatpush.msra.mxu0 %v56
    %178 = vmatpush.msra.mxu0 %v55
    %179 = vmatpush.msra.mxu0 %v54
    %180 = vmatpush.msra.mxu0 %v53
    %181 = vmatmul.f32.gmra.mxu0 %v46
    %v182 = vpop.f32.mrf.mxu0
    %v183 = vadd.f32 0.0, %v182
    %184 = vdwg.mxu0
    %185 = vmatpush.msra.mxu0 %v84
    %186 = vmatpush.msra.mxu0 %v83
    %187 = vmatpush.msra.mxu0 %v82
    %188 = vmatpush.msra.mxu0 %v81
    %189 = vmatpush.msra.mxu0 %v80
    %190 = vmatpush.msra.mxu0 %v79
    %191 = vmatpush.msra.mxu0 %v78
    %192 = vmatpush.msra.mxu0 %v77
    %193 = vmatpush.msra.mxu0 %v76
    %194 = vmatpush.msra.mxu0 %v75
    %195 = vmatpush.msra.mxu0 %v74
    %196 = vmatpush.msra.mxu0 %v73
    %197 = vmatpush.msra.mxu0 %v72
    %198 = vmatpush.msra.mxu0 %v71
    %199 = vmatpush.msra.mxu0 %v70
    %200 = vmatpush.msra.mxu0 %v69
    %201 = vmatmul.f32.gmra.mxu0 %v47
    %v202 = vpop.f32.mrf.mxu0
    %v203 = vadd.f32 %v183, %v202
    %204 = vdwg.mxu0
    %205 = vmatpush.msra.mxu0 %v100
    %206 = vmatpush.msra.mxu0 %v99
    %207 = vmatpush.msra.mxu0 %v98
    %208 = vmatpush.msra.mxu0 %v97
    %209 = vmatpush.msra.mxu0 %v96
    %210 = vmatpush.msra.mxu0 %v95
    %211 = vmatpush.msra.mxu0 %v94
    %212 = vmatpush.msra.mxu0 %v93
    %213 = vmatpush.msra.mxu0 %v92
    %214 = vmatpush.msra.mxu0 %v91
    %215 = vmatpush.msra.mxu0 %v90
    %216 = vmatpush.msra.mxu0 %v89
    %217 = vmatpush.msra.mxu0 %v88
    %218 = vmatpush.msra.mxu0 %v87
    %219 = vmatpush.msra.mxu0 %v86
    %220 = vmatpush.msra.mxu0 %v85
    %221 = vmatmul.f32.gmra.mxu0 %v48
    %v222 = vpop.f32.mrf.mxu0
    %v223 = vadd.f32 %v203, %v222
    %224 = vdwg.mxu0
    %225 = vmatpush.msra.mxu0 %v116
    %226 = vmatpush.msra.mxu0 %v115
    %227 = vmatpush.msra.mxu0 %v114
    %228 = vmatpush.msra.mxu0 %v113
    %229 = vmatpush.msra.mxu0 %v112
    %230 = vmatpush.msra.mxu0 %v111
    %231 = vmatpush.msra.mxu0 %v110
    %232 = vmatpush.msra.mxu0 %v109
    %233 = vmatpush.msra.mxu0 %v108
    %234 = vmatpush.msra.mxu0 %v107
    %235 = vmatpush.msra.mxu0 %v106
    %236 = vmatpush.msra.mxu0 %v105
    %237 = vmatpush.msra.mxu0 %v104
    %238 = vmatpush.msra.mxu0 %v103
    %239 = vmatpush.msra.mxu0 %v102
    %240 = vmatpush.msra.mxu0 %v101
    %241 = vmatmul.f32.gmra.mxu0 %v49
    %v242 = vpop.f32.mrf.mxu0
    %v243 = vadd.f32 %v223, %v242
    %244 = vdwg.mxu0
    %245 = vmatpush.msra.mxu0 %v132
    %246 = vmatpush.msra.mxu0 %v131
    %247 = vmatpush.msra.mxu0 %v130
    %248 = vmatpush.msra.mxu0 %v129
    %249 = vmatpush.msra.mxu0 %v128
    %250 = vmatpush.msra.mxu0 %v127
    %251 = vmatpush.msra.mxu0 %v126
    %252 = vmatpush.msra.mxu0 %v125
    %253 = vmatpush.msra.mxu0 %v124
    %254 = vmatpush.msra.mxu0 %v123
    %255 = vmatpush.msra.mxu0 %v122
    %256 = vmatpush.msra.mxu0 %v121
    %257 = vmatpush.msra.mxu0 %v120
    %258 = vmatpush.msra.mxu0 %v119
    %259 = vmatpush.msra.mxu0 %v118
    %260 = vmatpush.msra.mxu0 %v117
    %261 = vmatmul.f32.gmra.mxu0 %v50
    %v262 = vpop.f32.mrf.mxu0
    %v263 = vadd.f32 %v243, %v262
    %264 = vdwg.mxu0
    %265 = vmatpush.msra.mxu0 %v148
    %266 = vmatpush.msra.mxu0 %v147
    %267 = vmatpush.msra.mxu0 %v146
    %268 = vmatpush.msra.mxu0 %v145
    %269 = vmatpush.msra.mxu0 %v144
    %270 = vmatpush.msra.mxu0 %v143
    %271 = vmatpush.msra.mxu0 %v142
    %272 = vmatpush.msra.mxu0 %v141
    %273 = vmatpush.msra.mxu0 %v140
    %274 = vmatpush.msra.mxu0 %v139
    %275 = vmatpush.msra.mxu0 %v138
    %276 = vmatpush.msra.mxu0 %v137
    %277 = vmatpush.msra.mxu0 %v136
    %278 = vmatpush.msra.mxu0 %v135
    %279 = vmatpush.msra.mxu0 %v134
    %280 = vmatpush.msra.mxu0 %v133
    %281 = vmatmul.f32.gmra.mxu0 %v51
    %v282 = vpop.f32.mrf.mxu0
    %v283 = vadd.f32 %v263, %v282
    %284 = vdwg.mxu0
    %285 = vmatpush.msra.mxu0 %v164
    %286 = vmatpush.msra.mxu0 %v163
    %287 = vmatpush.msra.mxu0 %v162
    %288 = vmatpush.msra.mxu0 %v161
    %289 = vmatpush.msra.mxu0 %v160
    %290 = vmatpush.msra.mxu0 %v159
    %291 = vmatpush.msra.mxu0 %v158
    %292 = vmatpush.msra.mxu0 %v157
    %293 = vmatpush.msra.mxu0 %v156
    %294 = vmatpush.msra.mxu0 %v155
    %295 = vmatpush.msra.mxu0 %v154
    %296 = vmatpush.msra.mxu0 %v153
    %297 = vmatpush.msra.mxu0 %v152
    %298 = vmatpush.msra.mxu0 %v151
    %299 = vmatpush.msra.mxu0 %v150
    %300 = vmatpush.msra.mxu0 %v149
    %301 = vmatmul.f32.gmra.mxu0 %v52
    %v302 = vpop.f32.mrf.mxu0
    %v303 = vadd.f32 %v283, %v302
    %304 = vdwg.mxu0
    %v305 = vld [vmem:[%s2] sm:$0x1]
    %v307 = vperm.slane %v305, 0
    %v309 = vmul.f32 %v303, %v307
    %v310 = vld [vmem:[%s3] sm:$0x1]
    %v312 = vperm.slane %v310, 0
    %v314 = vadd.f32 %v309, %v312
    %vm315 = vcmp.ge.f32.partialorder %v314, 0.0
    %v316 = vsel %vm315, 1.0, -1.0
    %v317 = vpack.c.bf16 %v316, %v316
    %v318 = vld [vmem:[%s4] sm:$0xf]
    %v319 = vld [vmem:[%s4 + $0x4] sm:$0xf]
    %v320 = vld [vmem:[%s4 + $0x8] sm:$0xf]
    %v321 = vld [vmem:[%s4 + $0xc] sm:$0xf]
    %v326 = vunpack.c.l.b16 %v318
    %v327 = vunpack.c.l.b16 %v319
    %v328 = vunpack.c.l.b16 %v320
    %v329 = vunpack.c.l.b16 %v321
    %v330 = vpack.c.b16 %v327, %v326
    %v331 = vpack.c.b16 %v329, %v328
    %vm334 = vcmask 261120
    %v336 = vsel %vm334, %v317, 0
    %338 = vmatpush.bf16.msra.mxu0 0
    %339 = vmatpush.bf16.msra.mxu0 0
    %340 = vmatpush.bf16.msra.mxu0 0
    %341 = vmatpush.bf16.msra.mxu0 0
    %342 = vmatpush.bf16.msra.mxu0 0
    %343 = vmatpush.bf16.msra.mxu0 0
    %344 = vmatpush.bf16.msra.mxu0 %v331
    %345 = vmatpush.bf16.msra.mxu0 %v330
    %346 = vmatmul.bf16.gmra.mxu0 %v336
    %v347 = vpop.f32.mrf.mxu0
    %v348 = vadd.f32 0.0, %v347
    %v349 = vpop.f32.mrf.mxu0
    %350 = vdwg.mxu0
    %v351 = vld [vmem:[%s5] sm:$0x1]
    %v353 = vperm.slane %v351, 0
    %v355 = vmul.f32 %v348, %v353
    %v356 = vld [vmem:[%s6] sm:$0x1]
    %v358 = vperm.slane %v356, 0
    %v360 = vadd.f32 %v355, %v358
    %vm361 = vcmp.ge.f32.partialorder %v360, 0.0
    %v362 = vsel %vm361, 1.0, -1.0
    %v363 = vpack.c.bf16 %v362, %v362
    %v364 = vld [vmem:[%s7] sm:$0xf]
    %v365 = vld [vmem:[%s7 + $0x4] sm:$0xf]
    %v366 = vld [vmem:[%s7 + $0x8] sm:$0xf]
    %v367 = vld [vmem:[%s7 + $0xc] sm:$0xf]
    %v372 = vunpack.c.l.b16 %v364
    %v373 = vunpack.c.l.b16 %v365
    %v374 = vunpack.c.l.b16 %v366
    %v375 = vunpack.c.l.b16 %v367
    %v376 = vpack.c.b16 %v373, %v372
    %v377 = vpack.c.b16 %v375, %v374
    %v381 = vsel %vm334, %v363, 0
    %383 = vmatpush.bf16.msra.mxu0 0
    %384 = vmatpush.bf16.msra.mxu0 0
    %385 = vmatpush.bf16.msra.mxu0 0
    %386 = vmatpush.bf16.msra.mxu0 0
    %387 = vmatpush.bf16.msra.mxu0 0
    %388 = vmatpush.bf16.msra.mxu0 0
    %389 = vmatpush.bf16.msra.mxu0 %v377
    %390 = vmatpush.bf16.msra.mxu0 %v376
    %391 = vmatmul.bf16.gmra.mxu0 %v381
    %v392 = vpop.f32.mrf.mxu0
    %v393 = vadd.f32 0.0, %v392
    %v394 = vpop.f32.mrf.mxu0
    %395 = vdwg.mxu0
    %v396 = vld [vmem:[%s8] sm:$0x1]
    %v398 = vperm.slane %v396, 0
    %v400 = vmul.f32 %v393, %v398
    %v401 = vld [vmem:[%s9] sm:$0x1]
    %v403 = vperm.slane %v401, 0
    %v405 = vadd.f32 %v400, %v403
    %vm406 = vcmp.ge.f32.partialorder %v405, 0.0
    %v407 = vsel %vm406, 1.0, -1.0
    %v408 = vpack.c.bf16 %v407, %v407
    %v409 = vld [vmem:[%s10] sm:$0xf]
    %v410 = vld [vmem:[%s10 + $0x4] sm:$0xf]
    %v411 = vld [vmem:[%s10 + $0x8] sm:$0xf]
    %v412 = vld [vmem:[%s10 + $0xc] sm:$0xf]
    %v417 = vunpack.c.l.b16 %v409
    %v418 = vunpack.c.l.b16 %v410
    %v419 = vunpack.c.l.b16 %v411
    %v420 = vunpack.c.l.b16 %v412
    %v421 = vpack.c.b16 %v418, %v417
    %v422 = vpack.c.b16 %v420, %v419
    %v426 = vsel %vm334, %v408, 0
    %428 = vmatpush.bf16.msra.mxu0 0
    %429 = vmatpush.bf16.msra.mxu0 0
    %430 = vmatpush.bf16.msra.mxu0 0
    %431 = vmatpush.bf16.msra.mxu0 0
    %432 = vmatpush.bf16.msra.mxu0 0
    %433 = vmatpush.bf16.msra.mxu0 0
    %434 = vmatpush.bf16.msra.mxu0 %v422
    %435 = vmatpush.bf16.msra.mxu0 %v421
    %436 = vmatmul.bf16.gmra.mxu0 %v426
    %v437 = vpop.f32.mrf.mxu0
    %v438 = vadd.f32 0.0, %v437
    %v439 = vpop.f32.mrf.mxu0
    %440 = vdwg.mxu0
    %v441 = vld [vmem:[%s11] sm:$0x1]
    %v443 = vperm.slane %v441, 0
    %v445 = vmul.f32 %v438, %v443
    %v446 = vld [vmem:[%s12] sm:$0x1]
    %v448 = vperm.slane %v446, 0
    %v450 = vadd.f32 %v445, %v448
    %451 = vst [vmem:[#allocation2] sm:$0xff] %v450
    // Predicated region
    $region54: #{tpu_custom_call.1} parent=1 // pred_check
      _
    $region55: #{tpu_custom_call.1} parent=1 // pred_check_branch
      %453 = sbr.rel (0) target = $region57
    $region56: #{tpu_custom_call.1} parent=1 // pred_region
      %455 = vsyncadd [#allocation3], 0
      %s457 = sshll.u32 [#allocation2], 4
      %s458 = int_to_ptr.vmem [resolvable:$true] %s457
      %s459 = sshll.u32 %s13, 4
      %s460 = int_to_ptr.hbm [resolvable:$true] %s459
      %462 = dma.vmem_to_hbm [thread:$0]  %s458, 128, %s460, [#allocation3]
    $region57: #{tpu_custom_call.1} parent=1 // pred_fallthru
      _
    // Predicated region
    $region58: #{tpu_custom_call.1} parent=1 // pred_check
      _
    $region59: #{tpu_custom_call.1} parent=1 // pred_check_branch
      %464 = sbr.rel (0) target = $region61
    $region60: #{tpu_custom_call.1} parent=1 // pred_region
      %466 = dma.done [#allocation3], 128
    $region61: #{tpu_custom_call.1} parent=1 // pred_fallthru
      _
    %467 = vsyncpa [#allocation3], 1

</llo_original>
